<compile_context>
chip_gen: v5e
topology: v5e:2x2
jax: 0.10.0
libtpu: 0.0.40
codegen_flags: <defaults>
</compile_context>

<pallas_src>
import jax
import jax.numpy as jnp
from jax import lax
from jax.experimental import pallas as pl
from jax.experimental.pallas import tpu as pltpu

LANES = 128
CHUNK_ROWS = 8          # one f32 vreg (8 x 128) per array per inner step
MAX_TILE_ROWS = 4096    # 4096 x 128 f32 = 2 MiB per input block


def _round_up(x, m):
    return ((x + m - 1) // m) * m


def _default_num_shards():
    # Two TensorCore shards only help on megacore-style parts (v4/v5p/v7x);
    # on single-TC chips (v5e/v6e) an extra shard just shrinks the tile.
    try:
        kind = jax.devices()[0].device_kind.lower()
    except Exception:
        return 1
    single_tc = any(s in kind for s in
                    ("v5e", "v5 lite", "v5litepod", "v6e", "v6 lite"))
    return 1 if single_tc else 2


def bce_with_dice_loss(y_pred, y_true, *, num_shards=None,
                       max_tile_rows=MAX_TILE_ROWS):
    assert y_pred.shape == y_true.shape
    n_elems = int(y_pred.size)
    assert n_elems > 0

    if num_shards is None:
        num_shards = _default_num_shards()

    # Row-major flatten == torch .reshape(-1); free bitcast, no HBM copy.
    p_flat = jnp.ravel(y_pred)
    t_flat = jnp.ravel(y_true)

    # Lane-dense (rows, 128) view.  For 128-aligned element counts (the common
    # case) this is a free reshape.  Only a misaligned count takes the small
    # lane-pad fallback below; the ragged ROW tail is always masked in-kernel.
    if n_elems % LANES != 0:
        # Uncommon path: pad to the next lane boundary (p=0, t=0 contributes 0).
        lane_pad = _round_up(n_elems, LANES) - n_elems
        p_flat = jnp.pad(p_flat, (0, lane_pad))
        t_flat = jnp.pad(t_flat, (0, lane_pad))
    rows = int(p_flat.size) // LANES
    p2d = p_flat.reshape(rows, LANES)
    t2d = t_flat.reshape(rows, LANES)

    # Shard / tile geometry (all static Python ints).
    num_shards = max(1, min(num_shards, rows // 8))          # every shard has work
    tile_rows = min(max_tile_rows,
                    max(CHUNK_ROWS, _round_up(pl.cdiv(rows, num_shards), CHUNK_ROWS)))
    steps = pl.cdiv(rows, num_shards * tile_rows)
    covered_rows = num_shards * steps * tile_rows
    need_mask = covered_rows != rows                          # boundary-block rows
    nchunks = tile_rows // CHUNK_ROWS
    unroll = min(8, nchunks)

    def kernel(p_ref, t_ref, out_ref):
        c = pl.program_id(0)   # shard axis ("parallel")
        j = pl.program_id(1)   # reduction axis ("arbitrary")

        @pl.when(j == 0)
        def _():
            out_ref[...] = jnp.zeros_like(out_ref)

        if need_mask:
            block_row0 = (c * steps + j) * tile_rows
            valid_rows = rows - block_row0          # may be <= 0 or > tile_rows
            row_iota = lax.broadcasted_iota(jnp.int32, (CHUNK_ROWS, LANES), 0)

        def body(i, carry):
            bce_a, tp_a, tps_a = carry
            r = pl.multiple_of(i * CHUNK_ROWS, CHUNK_ROWS)
            p = p_ref[pl.ds(r, CHUNK_ROWS), :].astype(jnp.float32)
            t = t_ref[pl.ds(r, CHUNK_ROWS), :].astype(jnp.float32)
            if need_mask:
                m = (row_iota + r) < valid_rows
                p = jnp.where(m, p, 0.0)
                t = jnp.where(m, t, 0.0)
            # torch-style BCE; -100 clamp BEFORE the multiply by t (so masked
            # p=0, t=0 elements contribute exactly 0 and never -inf*0 NaNs).
            # Positive log-likelihood form; negated once in the epilogue.
            log_p = jnp.maximum(jnp.log(p), -100.0)
            log_1mp = jnp.maximum(jnp.log(1.0 - p), -100.0)
            bce_a = bce_a + (log_1mp + t * (log_p - log_1mp))
            tp_a = tp_a + t * p
            tps_a = tps_a + (t + p)
            return bce_a, tp_a, tps_a

        zero = jnp.zeros((CHUNK_ROWS, LANES), jnp.float32)
        bce_a, tp_a, tps_a = lax.fori_loop(0, nchunks, body, (zero, zero, zero),
                                           unroll=unroll)
        out_ref[0] += bce_a   # sum of log-likelihood terms
        out_ref[1] += tp_a    # sum of t*p       (dice intersection)
        out_ref[2] += tps_a   # sum of t + p     (dice denominator, fused)

    partials = pl.pallas_call(
        kernel,
        out_shape=jax.ShapeDtypeStruct((num_shards * 3, 8, LANES), jnp.float32),
        grid_spec=pltpu.PrefetchScalarGridSpec(
            num_scalar_prefetch=0,
            grid=(num_shards, steps),
            in_specs=[
                pl.BlockSpec((tile_rows, LANES), lambda c, j: (c * steps + j, 0)),
                pl.BlockSpec((tile_rows, LANES), lambda c, j: (c * steps + j, 0)),
            ],
            # Per-shard resident (3, 8, 128) partial-sum block; constant across
            # the reduction axis j (accumulator pattern).
            out_specs=pl.BlockSpec((3, 8, LANES), lambda c, j: (c, 0, 0)),
        ),
        compiler_params=pltpu.CompilerParams(
            dimension_semantics=("parallel", "arbitrary"),
            vmem_limit_bytes=32 * 1024 * 1024,
        ),
    )(p2d, t2d)

    # Tiny epilogue: combine shard partials, negate the BCE sum, dice formula.
    sums = partials.reshape(num_shards, 3, 8 * LANES).sum(axis=(0, 2))
    bce_mean = -sums[0] * (1.0 / n_elems)
    smooth = 1.0
    dice = 1.0 - (2.0 * sums[1] + smooth) / (sums[2] + smooth)
    return bce_mean + dice


def _reference(y_pred, y_true):
    p = y_pred.astype(jnp.float32).reshape(-1)
    t = y_true.astype(jnp.float32).reshape(-1)
    bce = jnp.mean(-(t * jnp.maximum(jnp.log(p), -100.0)
                     + (1.0 - t) * jnp.maximum(jnp.log(1.0 - p), -100.0)))
    inter = jnp.sum(t * p)
    dice = 1.0 - (2.0 * inter + 1.0) / (jnp.sum(t) + jnp.sum(p) + 1.0)
    return bce + dice


if __name__ == "__main__":
    key = jax.random.PRNGKey(0)
    k1, k2 = jax.random.split(key)
    # NCHW, same as PyTorch conv layout: batch=2, channels=4, spatial=16x16
    x_shape = (2, 4, 16, 16)
    # y_pred: probabilities in (0, 1); y_true: binary mask
    y_pred = jax.nn.sigmoid(jax.random.normal(k1, x_shape, dtype=jnp.float32))
    y_true = (jax.random.uniform(k2, x_shape) > 0.5).astype(jnp.float32)

    loss_fn = jax.jit(bce_with_dice_loss)
    loss = jax.block_until_ready(loss_fn(y_pred, y_true))
    ref = jax.block_until_ready(_reference(y_pred, y_true))
    assert jnp.allclose(loss, ref, atol=1e-5, rtol=1e-5), (loss, ref)
    print("KERNEL_OK")
</pallas_src>

<mosaic_0001>
module attributes {stable_mosaic.version = 11 : i64} {
  func.func @kernel(%arg0: i32, %arg1: i32, %arg2: memref<8x128xf32, #tpu.memory_space<vmem>>, %arg3: memref<8x128xf32, #tpu.memory_space<vmem>>, %arg4: memref<3x8x128xf32, #tpu.memory_space<vmem>>) attributes {dimension_semantics = [#tpu.dimension_semantics<parallel>, #tpu.dimension_semantics<arbitrary>], iteration_bounds = array<i64: 2, 1>, scalar_prefetch = 0 : i64, scratch_operands = 0 : i64, tpu.core_type = #tpu.core_type<tc>, window_params = [{transform_indices = @transform_0, window_bounds = array<i64: 8, 128>}, {transform_indices = @transform_1, window_bounds = array<i64: 8, 128>}, {transform_indices = @transform_2, window_bounds = array<i64: 3, 8, 128>}]} {
    %c0_i32 = arith.constant 0 : i32
    %0 = arith.cmpi eq, %arg1, %c0_i32 : i32
    %1 = arith.extui %0 : i1 to i32
    %c0_i32_0 = arith.constant 0 : i32
    %2 = arith.cmpi ne, %1, %c0_i32_0 : i32
    scf.if %2 {
      %cst_22 = arith.constant 0.000000e+00 : f32
      %44 = vector.broadcast %cst_22 : f32 to vector<3x8x128xf32>
      %c0_23 = arith.constant 0 : index
      %c0_24 = arith.constant 0 : index
      %c0_25 = arith.constant 0 : index
      %45 = vector.load %arg4[%c0_23, %c0_24, %c0_25] : memref<3x8x128xf32, #tpu.memory_space<vmem>>, vector<3x8x128xf32>
      tpu.vector_store %arg4[%c0_23, %c0_24, %c0_25], %44 {strides = array<i32>} : memref<3x8x128xf32, #tpu.memory_space<vmem>>, vector<3x8x128xf32>,
    } else {
    }
    %cst = arith.constant 0.000000e+00 : f32
    %3 = vector.broadcast %cst : f32 to vector<8x128xf32>
    %c0_i32_1 = arith.constant 0 : i32
    %c8_i32 = arith.constant 8 : i32
    %4 = arith.muli %c0_i32_1, %c8_i32 : i32
    %5 = tpu.assume_multiple %4, 8 : i32
    %6 = arith.index_cast %5 : i32 to index
    %c0 = arith.constant 0 : index
    %7 = vector.load %arg2[%6, %c0] : memref<8x128xf32, #tpu.memory_space<vmem>>, vector<8x128xf32>
    %8 = arith.index_cast %5 : i32 to index
    %c0_2 = arith.constant 0 : index
    %9 = vector.load %arg3[%8, %c0_2] : memref<8x128xf32, #tpu.memory_space<vmem>>, vector<8x128xf32>
    %10 = math.log %7 : vector<8x128xf32>
    %cst_3 = arith.constant -1.000000e+02 : f32
    %11 = vector.broadcast %cst_3 : f32 to vector<8x128xf32>
    %12 = arith.maximumf %10, %11 : vector<8x128xf32>
    %cst_4 = arith.constant 1.000000e+00 : f32
    %13 = vector.broadcast %cst_4 : f32 to vector<8x128xf32>
    %14 = arith.subf %13, %7 : vector<8x128xf32>
    %15 = math.log %14 : vector<8x128xf32>
    %cst_5 = arith.constant -1.000000e+02 : f32
    %16 = vector.broadcast %cst_5 : f32 to vector<8x128xf32>
    %17 = arith.maximumf %15, %16 : vector<8x128xf32>
    %18 = arith.subf %12, %17 : vector<8x128xf32>
    %19 = arith.mulf %9, %18 : vector<8x128xf32>
    %20 = arith.addf %17, %19 : vector<8x128xf32>
    %21 = arith.addf %3, %20 : vector<8x128xf32>
    %22 = arith.mulf %9, %7 : vector<8x128xf32>
    %23 = arith.addf %3, %22 : vector<8x128xf32>
    %24 = arith.addf %9, %7 : vector<8x128xf32>
    %25 = arith.addf %3, %24 : vector<8x128xf32>
    %c1_i32 = arith.constant 1 : i32
    %c0_6 = arith.constant 0 : index
    %c0_7 = arith.constant 0 : index
    %c0_8 = arith.constant 0 : index
    %26 = vector.load %arg4[%c0_6, %c0_7, %c0_8] : memref<3x8x128xf32, #tpu.memory_space<vmem>>, vector<1x8x128xf32>
    %27 = vector.shape_cast %26 : vector<1x8x128xf32> to vector<8x128xf32>
    %28 = arith.addf %27, %21 : vector<8x128xf32>
    %c0_9 = arith.constant 0 : index
    %c0_10 = arith.constant 0 : index
    %c0_11 = arith.constant 0 : index
    %29 = vector.load %arg4[%c0_9, %c0_10, %c0_11] : memref<3x8x128xf32, #tpu.memory_space<vmem>>, vector<1x8x128xf32>
    %30 = vector.shape_cast %29 : vector<1x8x128xf32> to vector<8x128xf32>
    %31 = vector.shape_cast %28 : vector<8x128xf32> to vector<1x8x128xf32>
    tpu.vector_store %arg4[%c0_9, %c0_10, %c0_11], %31 {strides = array<i32>} : memref<3x8x128xf32, #tpu.memory_space<vmem>>, vector<1x8x128xf32>,
    %c1 = arith.constant 1 : index
    %c0_12 = arith.constant 0 : index
    %c0_13 = arith.constant 0 : index
    %32 = vector.load %arg4[%c1, %c0_12, %c0_13] : memref<3x8x128xf32, #tpu.memory_space<vmem>>, vector<1x8x128xf32>
    %33 = vector.shape_cast %32 : vector<1x8x128xf32> to vector<8x128xf32>
    %34 = arith.addf %33, %23 : vector<8x128xf32>
    %c1_14 = arith.constant 1 : index
    %c0_15 = arith.constant 0 : index
    %c0_16 = arith.constant 0 : index
    %35 = vector.load %arg4[%c1_14, %c0_15, %c0_16] : memref<3x8x128xf32, #tpu.memory_space<vmem>>, vector<1x8x128xf32>
    %36 = vector.shape_cast %35 : vector<1x8x128xf32> to vector<8x128xf32>
    %37 = vector.shape_cast %34 : vector<8x128xf32> to vector<1x8x128xf32>
    tpu.vector_store %arg4[%c1_14, %c0_15, %c0_16], %37 {strides = array<i32>} : memref<3x8x128xf32, #tpu.memory_space<vmem>>, vector<1x8x128xf32>,
    %c2 = arith.constant 2 : index
    %c0_17 = arith.constant 0 : index
    %c0_18 = arith.constant 0 : index
    %38 = vector.load %arg4[%c2, %c0_17, %c0_18] : memref<3x8x128xf32, #tpu.memory_space<vmem>>, vector<1x8x128xf32>
    %39 = vector.shape_cast %38 : vector<1x8x128xf32> to vector<8x128xf32>
    %40 = arith.addf %39, %25 : vector<8x128xf32>
    %c2_19 = arith.constant 2 : index
    %c0_20 = arith.constant 0 : index
    %c0_21 = arith.constant 0 : index
    %41 = vector.load %arg4[%c2_19, %c0_20, %c0_21] : memref<3x8x128xf32, #tpu.memory_space<vmem>>, vector<1x8x128xf32>
    %42 = vector.shape_cast %41 : vector<1x8x128xf32> to vector<8x128xf32>
    %43 = vector.shape_cast %40 : vector<8x128xf32> to vector<1x8x128xf32>
    tpu.vector_store %arg4[%c2_19, %c0_20, %c0_21], %43 {strides = array<i32>} : memref<3x8x128xf32, #tpu.memory_space<vmem>>, vector<1x8x128xf32>,
    return
  }
  func.func @transform_0(%arg0: i32, %arg1: i32) -> (i32, i32) {
    %c1_i32 = arith.constant 1 : i32
    %0 = arith.muli %arg0, %c1_i32 : i32
    %1 = arith.addi %0, %arg1 : i32
    %c0_i32 = arith.constant 0 : i32
    %c0_i32_0 = arith.constant 0 : i32
    return %1, %c0_i32 : i32, i32
  }
  func.func @transform_1(%arg0: i32, %arg1: i32) -> (i32, i32) {
    %c1_i32 = arith.constant 1 : i32
    %0 = arith.muli %arg0, %c1_i32 : i32
    %1 = arith.addi %0, %arg1 : i32
    %c0_i32 = arith.constant 0 : i32
    %c0_i32_0 = arith.constant 0 : i32
    return %1, %c0_i32 : i32, i32
  }
  func.func @transform_2(%arg0: i32, %arg1: i32) -> (i32, i32, i32) {
    %c0_i32 = arith.constant 0 : i32
    %c0_i32_0 = arith.constant 0 : i32
    %c0_i32_1 = arith.constant 0 : i32
    return %arg0, %c0_i32, %c0_i32_0 : i32, i32, i32
  }
}

</mosaic_0001>

<llo_original>
// kernel: bce_with_dice_loss.1
$region0: #{bce_with_dice_loss.1}
  #allocation0 [shape = 'u32[]', space=smem, size = 0x4, offset = 0x4, fixed_abs, tag = 'smem constant byte address 0x4 - core index']
  #allocation1 [shape = 'u32[72,128]{1,0:T(1,128)}', space=vmem, size = 0x9000, scoped, tag = 'internal scratch']
  %s0 = inlined_call_operand.vmem [shape: f32[16,128], index: 0, kind: input, shape index: {}]
  %s1 = inlined_call_operand.vmem [shape: f32[16,128], index: 1, kind: input, shape index: {}]
  %s2 = inlined_call_operand.vmem [shape: f32[6,8,128], index: 2, kind: output, shape index: {}]
  %s3 = sld [smem:[#allocation0]]
  $region45: #{bce_with_dice_loss.1} parent=0
    _
  %s5 = ssub.s32 1, %s3
  %s6 = scalar_select 0, %s5, %s3
  loop: start=0, step=1, limit=4
  $region2: #{bce_with_dice_loss.1} parent=0 // loop_pre_header
    _
  $region3: #{bce_with_dice_loss.1} parent=0 // loop_header
    %s8 = sphi 0, %s12
    %p9 = scmp.ge.s32.totalorder %s8, 4
    %s15 = sphi 0, %s27
    %s16 = sphi 0, %s23
    %s17 = sphi 0, %s15
    %s18 = sphi 0, %s16
    %s19 = sphi 0, %s17
    %s20 = sphi 0, %s18
    %s32 = sphi 0, %s34
    %s35 = sphi 0, %s32
    %s36 = sphi 0, %s35
    %s52 = sphi 0, %s36
    %s60 = sphi 0, %s62
    %s63 = sphi 0, %s60
    %s64 = sphi 0, %s63
    %s80 = sphi 0, %s64
    %s86 = sphi 0, %s88
    %s89 = sphi 0, %s86
    %s90 = sphi 0, %s89
    %s106 = sphi 0, %s90
  $region4: #{bce_with_dice_loss.1} parent=0 // loop_header_branch
    %11 = sbr.rel (%p9) target = $region8
  $region5: #{bce_with_dice_loss.1} parent=0 // loop_body
    %s13 = ssub.s32 %s8, 1
    %s14 = ssub.s32 %s8, 2
    %s21 = sadd.s32 1, %s16
    %p22 = scmp.ge.s32.totalorder %s21, 1
    %s23 = scalar_select %p22, 0, %s21
    %s24 = sadd.s32 1, %s15
    %s25 = scalar_select %p22, %s24, %s15
    %p26 = scmp.ge.s32.totalorder %s25, 2
    %s27 = scalar_select %p26, 0, %s25
    %s28 = sadd.s32 %s15, %s16
    %s29 = sadd.s32 %s27, %s23
    %s30 = ssub.s32 %s28, %s29
    %p31 = scmp.eq.s32.totalorder %s30, 0
    %s33 = sadd.s32 %s32, 1
    %s34 = scalar_select %p31, %s32, %s33
    %p37 = pneg %p31
    %p38 = scmp.eq.s32.totalorder %s8, 1
    %p39 = por %p37, %p38
    %p40 = scmp.ne.s32.totalorder %s32, %s35
    %p41 = scmp.eq.s32.totalorder %s8, 0
    %p42 = por %p40, %p41
    %p43 = scmp.ne.s32.totalorder %s32, %s35
    %p44 = scmp.eq.s32.totalorder %s13, 1
    %p45 = por %p43, %p44
    %p46 = scmp.ne.s32.totalorder %s35, %s36
    %p47 = scmp.eq.s32.totalorder %s13, 0
    %p48 = por %p46, %p47
    %p49 = scmp.ne.s32.totalorder %s35, %s36
    %p50 = scmp.eq.s32.totalorder %s14, 1
    %p51 = por %p49, %p50
    %p53 = scmp.ne.s32.totalorder %s36, %s52
    %p54 = scmp.eq.s32.totalorder %s14, 0
    %p55 = por %p53, %p54
    %s56 = sadd.s32 %s15, %s16
    %s57 = sadd.s32 %s27, %s23
    %s58 = ssub.s32 %s56, %s57
    %p59 = scmp.eq.s32.totalorder %s58, 0
    %s61 = sadd.s32 %s60, 1
    %s62 = scalar_select %p59, %s60, %s61
    %p65 = pneg %p59
    %p66 = scmp.eq.s32.totalorder %s8, 1
    %p67 = por %p65, %p66
    %p68 = scmp.ne.s32.totalorder %s60, %s63
    %p69 = scmp.eq.s32.totalorder %s8, 0
    %p70 = por %p68, %p69
    %p71 = scmp.ne.s32.totalorder %s60, %s63
    %p72 = scmp.eq.s32.totalorder %s13, 1
    %p73 = por %p71, %p72
    %p74 = scmp.ne.s32.totalorder %s63, %s64
    %p75 = scmp.eq.s32.totalorder %s13, 0
    %p76 = por %p74, %p75
    %p77 = scmp.ne.s32.totalorder %s63, %s64
    %p78 = scmp.eq.s32.totalorder %s14, 1
    %p79 = por %p77, %p78
    %p81 = scmp.ne.s32.totalorder %s64, %s80
    %p82 = scmp.eq.s32.totalorder %s14, 0
    %p83 = por %p81, %p82
    %s84 = ssub.s32 %s15, %s27
    %p85 = scmp.eq.s32.totalorder %s84, 0
    %s87 = sadd.s32 %s86, 1
    %s88 = scalar_select %p85, %s86, %s87
    %p91 = pneg %p85
    %p92 = scmp.eq.s32.totalorder %s8, 1
    %p93 = por %p91, %p92
    %p94 = scmp.ne.s32.totalorder %s86, %s89
    %p95 = scmp.eq.s32.totalorder %s8, 0
    %p96 = por %p94, %p95
    %p97 = scmp.ne.s32.totalorder %s86, %s89
    %p98 = scmp.eq.s32.totalorder %s13, 1
    %p99 = por %p97, %p98
    %p100 = scmp.ne.s32.totalorder %s89, %s90
    %p101 = scmp.eq.s32.totalorder %s13, 0
    %p102 = por %p100, %p101
    %p103 = scmp.ne.s32.totalorder %s89, %s90
    %p104 = scmp.eq.s32.totalorder %s14, 1
    %p105 = por %p103, %p104
    %p107 = scmp.ne.s32.totalorder %s90, %s106
    %p108 = scmp.eq.s32.totalorder %s14, 0
    %p109 = por %p107, %p108
    %p110 = scmp.le.s32.totalorder 1, %s8
    %p111 = scmp.lt.s32.totalorder %s8, 3
    %p112 = pnand %p110, %p111
    %p113 = pneg %p112
    // Predicated region
    $region9: #{bce_with_dice_loss.1} parent=5 // pred_check
      _
    $region10: #{bce_with_dice_loss.1} parent=5 // pred_check_branch
      %115 = sbr.rel (%p112) target = $region12
    $region11: #{bce_with_dice_loss.1} parent=5 // pred_region
      %s116 = ssub.s32 %s8, 1
    $region12: #{bce_with_dice_loss.1} parent=5 // pred_fallthru
      _
    %p117 = scmp.lt.s32.totalorder %s8, 2
    // Predicated region
    $region13: #{bce_with_dice_loss.1} parent=5 // pred_check
      %p118 = pneg %p117
    $region14: #{bce_with_dice_loss.1} parent=5 // pred_check_branch
      %120 = sbr.rel (%p118) target = $region16
    $region15: #{bce_with_dice_loss.1} parent=5 // pred_region
      // Predicated region
      $region17: #{bce_with_dice_loss.1} parent=15 // pred_check
        %p121 = pneg %p42
      $region18: #{bce_with_dice_loss.1} parent=15 // pred_check_branch
        %123 = sbr.rel (%p121) target = $region20
      $region19: #{bce_with_dice_loss.1} parent=15 // pred_region
        %s124 = sadd.s32 %s15, %s16
        %p125 = scmp.lt.s32.totalorder %s124, 1
        %s126 = scalar_select %p125, %s124, 1
        %s127 = smul.addr %s126, 8
        %s128 = scalar_lea.vmem %s0, %s127
        %s129 = sadd.s32 %s15, %s16
      $region20: #{bce_with_dice_loss.1} parent=15 // pred_fallthru
        _
      // Predicated region
      $region21: #{bce_with_dice_loss.1} parent=15 // pred_check
        %p130 = pneg %p70
      $region22: #{bce_with_dice_loss.1} parent=15 // pred_check_branch
        %132 = sbr.rel (%p130) target = $region24
      $region23: #{bce_with_dice_loss.1} parent=15 // pred_region
        %s133 = sadd.s32 %s15, %s16
        %p134 = scmp.lt.s32.totalorder %s133, 1
        %s135 = scalar_select %p134, %s133, 1
        %s136 = smul.addr %s135, 8
        %s137 = scalar_lea.vmem %s1, %s136
        %s138 = sadd.s32 %s15, %s16
      $region24: #{bce_with_dice_loss.1} parent=15 // pred_fallthru
        _
    $region16: #{bce_with_dice_loss.1} parent=5 // pred_fallthru
      _
    %p139 = scmp.le.s32.totalorder 1, %s8
    %p140 = scmp.lt.s32.totalorder %s8, 3
    %p141 = pnand %p139, %p140
    %p142 = pneg %p141
    // Predicated region
    $region25: #{bce_with_dice_loss.1} parent=5 // pred_check
      _
    $region26: #{bce_with_dice_loss.1} parent=5 // pred_check_branch
      %144 = sbr.rel (%p141) target = $region28
    $region27: #{bce_with_dice_loss.1} parent=5 // pred_region
      %s145 = ssub.s32 %s8, 1
      %s146 = sadd.s32 %s17, %s18
      %p147 = scmp.lt.s32.totalorder %s146, 1
      %s148 = scalar_select %p147, %s146, 1
      %s149 = smul.addr %s148, 8
      %s150 = scalar_lea.vmem %s0, %s149
      %p151 = pneg %p48
      %p152 = pneg %p45
      %s153 = sadd.s32 %s17, %s18
      %p154 = scmp.lt.s32.totalorder %s153, 1
      %s155 = scalar_select %p154, %s153, 1
      %s156 = smul.addr %s155, 8
      %s157 = scalar_lea.vmem %s1, %s156
      %p158 = pneg %p76
      %p159 = pneg %p73
      %p160 = pneg %p102
      %p161 = pneg %p99
      %s162 = smul.u32 3, %s17
      %p163 = scmp.lt.s32.totalorder %s162, 5
      %s164 = scalar_select %p163, %s162, 5
      %s165 = smul.addr %s164, 8
      %s166 = scalar_lea.vmem %s2, %s165
      %s167 = sadd.s32 %s17, %s18
      %p168 = scmp.lt.s32.totalorder %s167, 1
      %s169 = scalar_select %p168, %s167, 1
      %s170 = smul.addr %s169, 8
      %s171 = scalar_lea.vmem %s0, %s170
      %s172 = sadd.s32 %s17, %s18
      %s173 = sadd.s32 %s17, %s18
      %p174 = scmp.lt.s32.totalorder %s173, 1
      %s175 = scalar_select %p174, %s173, 1
      %s176 = smul.addr %s175, 8
      %s177 = scalar_lea.vmem %s1, %s176
      %s178 = sadd.s32 %s17, %s18
      %s179 = smul.u32 3, %s17
      %p180 = scmp.lt.s32.totalorder %s179, 5
      %s181 = scalar_select %p180, %s179, 5
      %s182 = smul.addr %s181, 8
      %s183 = scalar_lea.vmem %s2, %s182
      %s184 = smul.u32 3, %s17
      %p185 = scmp.eq.s32.totalorder %s18, 0
      // Predicated region
      $region29: #{bce_with_dice_loss.1} parent=27 // pred_check
        %p186 = pneg %p185
      $region30: #{bce_with_dice_loss.1} parent=27 // pred_check_branch
        %188 = sbr.rel (%p186) target = $region32
      $region31: #{bce_with_dice_loss.1} parent=27 // pred_region
        %189 = vst [vmem:[%s183] sm:$0xff] 0.0
        %190 = vst [vmem:[%s183 + $0x8] sm:$0xff] 0.0
        %191 = vst [vmem:[%s183 + $0x10] sm:$0xff] 0.0
      $region32: #{bce_with_dice_loss.1} parent=27 // pred_fallthru
        _
      %v192 = vld [vmem:[%s171] sm:$0xff]
      %v193 = vld [vmem:[%s177] sm:$0xff]
      %v194 = vlog2.pop %v192
      %v195 = vmul.f32 %v194, 0.6931472
      %v196 = vmax.f32 %v195, -100.0
      %v197 = vsub.f32 1.0, %v192
      %v198 = vlog2.pop %v197
      %v199 = vmul.f32 %v198, 0.6931472
      %v200 = vmax.f32 %v199, -100.0
      %v201 = vsub.f32 %v196, %v200
      %v202 = vmul.f32 %v193, %v201
      %v203 = vadd.f32 %v200, %v202
      %v204 = vadd.f32 %v203, 0.0
      %v205 = vmul.f32 %v193, %v192
      %v206 = vadd.f32 %v205, 0.0
      %v207 = vadd.f32 %v193, %v192
      %v208 = vadd.f32 %v207, 0.0
      %v209 = vld [vmem:[%s183] sm:$0xff]
      %v210 = vadd.f32 %v209, %v204
      %211 = vst [vmem:[%s183] sm:$0xff] %v210
      %s212 = scalar_lea.vmem %s183, 8
      %v213 = vld [vmem:[%s212] sm:$0xff]
      %v214 = vadd.f32 %v213, %v206
      %215 = vst [vmem:[%s212] sm:$0xff] %v214
      %s216 = scalar_lea.vmem %s183, 16
      %v217 = vld [vmem:[%s216] sm:$0xff]
      %v218 = vadd.f32 %v217, %v208
      %219 = vst [vmem:[%s216] sm:$0xff] %v218
      %s220 = smul.u32 3, %s17
      %p221 = scmp.lt.s32.totalorder %s220, 5
      %s222 = scalar_select %p221, %s220, 5
      %s223 = smul.addr %s222, 8
      %s224 = scalar_lea.vmem %s2, %s223
      // Predicated region
      $region33: #{bce_with_dice_loss.1} parent=27 // pred_check
        %p225 = pneg %p99
      $region34: #{bce_with_dice_loss.1} parent=27 // pred_check_branch
        %227 = sbr.rel (%p225) target = $region36
      $region35: #{bce_with_dice_loss.1} parent=27 // pred_region
        %s228 = smul.u32 3, %s17
      $region36: #{bce_with_dice_loss.1} parent=27 // pred_fallthru
        _
    $region28: #{bce_with_dice_loss.1} parent=5 // pred_fallthru
      _
    %p229 = scmp.le.s32.totalorder 2, %s8
    // Predicated region
    $region37: #{bce_with_dice_loss.1} parent=5 // pred_check
      %p230 = pneg %p229
    $region38: #{bce_with_dice_loss.1} parent=5 // pred_check_branch
      %232 = sbr.rel (%p230) target = $region40
    $region39: #{bce_with_dice_loss.1} parent=5 // pred_region
      %s233 = ssub.s32 %s8, 2
      // Predicated region
      $region41: #{bce_with_dice_loss.1} parent=39 // pred_check
        %p234 = pneg %p105
      $region42: #{bce_with_dice_loss.1} parent=39 // pred_check_branch
        %236 = sbr.rel (%p234) target = $region44
      $region43: #{bce_with_dice_loss.1} parent=39 // pred_region
        %s237 = smul.u32 3, %s19
        %p238 = scmp.lt.s32.totalorder %s237, 5
        %s239 = scalar_select %p238, %s237, 5
        %s240 = smul.addr %s239, 8
        %s241 = scalar_lea.vmem %s2, %s240
      $region44: #{bce_with_dice_loss.1} parent=39 // pred_fallthru
        _
    $region40: #{bce_with_dice_loss.1} parent=5 // pred_fallthru
      _
  $region6: #{bce_with_dice_loss.1} parent=0 // loop_footer
    %s12 = sadd.s32 1, %s8
  $region7: #{bce_with_dice_loss.1} parent=0 // loop_footer_branch
    %7 = sbr.rel target = $region3
  $region8: #{bce_with_dice_loss.1} parent=0 // loop_exit
    _

</llo_original>
